<compile_context>
chip_gen: v7x
topology: tpu7x:2x2x1
jax: 0.10.0
libtpu: 0.0.40
codegen_flags: <defaults>
</compile_context>

<pallas_src>
import functools

import jax
import jax.numpy as jnp
from jax.experimental import pallas as pl
from jax.experimental.pallas import tpu as pltpu


_VMEM_LIMIT_BYTES = 32 * 1024 * 1024        # safe scoped VMEM on v5e/v6e/v7x
_FUSED_WORKING_SET_CAP = 24 * 1024 * 1024   # v7x-safe double-buffered budget


def _min_sublane(itemsize):
    """Packed native sublane minimum: 8 (4-byte), 16 (2-byte), 32 (1-byte)."""
    return {4: 8, 2: 16, 1: 32}.get(itemsize, 8)


def _fused_fits(C, HW, itemsize):
    """Can one (C, HW) batch slab be processed fully fused in VMEM?"""
    slab = C * HW * itemsize
    need = (4 * slab            # input + output blocks, double-buffered
            + 2 * C * C * 4     # f32 mix weight, double-buffered
            + C * HW * 4        # worst-case f32 temporaries for the reduce
            + (2 << 20))        # slack
    return need <= _FUSED_WORKING_SET_CAP


def _pick_row_tile(rows, hw, itemsize):
    """Row tile for the two-pass fallback.

    Largest divisor of `rows` that (a) is a multiple of the dtype's packed
    sublane minimum, (b) keeps the input block around ~2 MiB, and (c) leaves
    at least 2 grid steps (pipelining / v7x megacore) when possible.  Falls
    back to the full row extent, which is always a legal block shape.
    """
    min_sub = _min_sublane(itemsize)
    divisors = [d for d in range(min_sub, rows + 1, min_sub) if rows % d == 0]
    if not divisors:
        return rows                       # full-extent exception
    target_bytes = 2 << 20
    cands = [d for d in divisors if d <= rows // 2] or divisors
    fits = [d for d in cands if d * hw * itemsize <= target_bytes]
    return max(fits) if fits else min(cands)


# ---------------------------------------------------------------------------
# Fused single-pass kernel: pool + channel mix + sigmoid + rescale per batch.
# ---------------------------------------------------------------------------
def _eca_fused_kernel(w_ref, x_ref, o_ref, *, bias):
    # w_ref: (C, C) f32, already scaled by gamma / HW.
    # x_ref, o_ref: (C, HW) in the input's native dtype (one batch slab).
    C = w_ref.shape[0]
    # Global-average-pool row sums (the 1/HW is folded into the weight).
    sums = jnp.sum(x_ref[...], axis=-1, keepdims=True, dtype=jnp.float32)
    # Tiny channel mix on the MXU.  Broadcasting the pooled column to 128
    # lanes keeps the matmul MXU-native (avoids an N=1 matmul); the extra
    # flops (C*C*128 per batch) are negligible.
    pooled_b = jnp.broadcast_to(sums, (C, 128))
    z = jnp.dot(w_ref[...], pooled_b, preferred_element_type=jnp.float32)
    s = jax.nn.sigmoid(z[:, :1] + bias).astype(o_ref.dtype)      # (C, 1)
    # Rescale the resident slab and write it out once.
    o_ref[...] = x_ref[...] * s


# ---------------------------------------------------------------------------
# Two-pass fallback kernels (row-blocked; last block dim is the full HW).
# ---------------------------------------------------------------------------
def _pool_kernel(x_ref, sum_ref):
    # x_ref: (Rt, HW) native dtype; sum_ref: (Rt, 1) f32 row sums.  The lane
    # reduce is VALU adds across vregs with one XLU finisher per block.
    sum_ref[...] = jnp.sum(x_ref[...], axis=-1, keepdims=True,
                           dtype=jnp.float32)


def _rescale_kernel(x_ref, s_ref, o_ref):
    # Pure mem-bound rescale in the input's native dtype.
    o_ref[...] = x_ref[...] * s_ref[...]


def eca_forward(x, weight, gamma=2.0, b=1.0, *, fuse=None):
    """ECALayer forward.

    x: (B, C, H, W) NCHW; weight: (C, C, 1) Conv1d weight.
    fuse: None (auto), True (force fused path), False (force two-pass path).
    """
    B, C, H, W = x.shape
    HW = H * W
    itemsize = jnp.dtype(x.dtype).itemsize
    # Fold gamma and the 1/HW of the average pool into the f32 mix weight.
    w_scaled = weight.reshape(C, C).astype(jnp.float32) * (float(gamma) / HW)
    x3 = x.reshape(B, C, HW)          # metadata-only reshape, no HBM traffic

    if fuse is None:
        fuse = _fused_fits(C, HW, itemsize)

    if fuse:
        # grid=(B,) is "parallel"; with B == 1 one v7x TensorCore idles, but
        # the op is HBM-bound (bandwidth is shared), so fused still wins.
        out = pl.pallas_call(
            functools.partial(_eca_fused_kernel, bias=float(b)),
            out_shape=jax.ShapeDtypeStruct((B, C, HW), x.dtype),
            grid_spec=pltpu.PrefetchScalarGridSpec(
                num_scalar_prefetch=0,
                grid=(B,),
                in_specs=[
                    pl.BlockSpec((C, C), lambda i: (0, 0)),        # resident
                    pl.BlockSpec((None, C, HW), lambda i: (i, 0, 0)),
                ],
                out_specs=pl.BlockSpec((None, C, HW), lambda i: (i, 0, 0)),
            ),
            compiler_params=pltpu.CompilerParams(
                dimension_semantics=("parallel",),
                vmem_limit_bytes=_VMEM_LIMIT_BYTES),
            cost_estimate=pl.CostEstimate(
                flops=int(2 * B * C * HW + 2 * B * C * C * 128),
                transcendentals=int(B * C),
                bytes_accessed=int(2 * B * C * HW * itemsize + C * C * 4)),
        )(w_scaled, x3)
        return out.reshape(B, C, H, W)

    # ---- Two-pass fallback: row-blocked pool, JAX mix, row-blocked scale. --
    rows = B * C
    x2 = x3.reshape(rows, HW)
    Rt = _pick_row_tile(rows, HW, itemsize)
    grid = (rows // Rt,)

    sums = pl.pallas_call(
        _pool_kernel,
        out_shape=jax.ShapeDtypeStruct((rows, 1), jnp.float32),
        grid_spec=pltpu.PrefetchScalarGridSpec(
            num_scalar_prefetch=0,
            grid=grid,
            in_specs=[pl.BlockSpec((Rt, HW), lambda i: (i, 0))],
            out_specs=pl.BlockSpec((Rt, 1), lambda i: (i, 0)),
        ),
        compiler_params=pltpu.CompilerParams(
            dimension_semantics=("parallel",),
            vmem_limit_bytes=_VMEM_LIMIT_BYTES),
        cost_estimate=pl.CostEstimate(
            flops=int(rows * HW),
            transcendentals=0,
            bytes_accessed=int(rows * HW * itemsize + rows * 4)),
    )(x2)

    # Tiny per-batch channel mix + sigmoid gate (negligible flops / bytes).
    z = sums.reshape(B, C) @ w_scaled.T                        # (B, C) f32
    s = jax.nn.sigmoid(z + float(b)).astype(x.dtype).reshape(rows, 1)

    out = pl.pallas_call(
        _rescale_kernel,
        out_shape=jax.ShapeDtypeStruct((rows, HW), x.dtype),
        grid_spec=pltpu.PrefetchScalarGridSpec(
            num_scalar_prefetch=0,
            grid=grid,
            in_specs=[pl.BlockSpec((Rt, HW), lambda i: (i, 0)),
                      pl.BlockSpec((Rt, 1), lambda i: (i, 0))],
            out_specs=pl.BlockSpec((Rt, HW), lambda i: (i, 0)),
        ),
        compiler_params=pltpu.CompilerParams(
            dimension_semantics=("parallel",),
            vmem_limit_bytes=_VMEM_LIMIT_BYTES),
        cost_estimate=pl.CostEstimate(
            flops=int(rows * HW),
            transcendentals=0,
            bytes_accessed=int((2 * rows * HW + rows) * itemsize)),
    )(x2, s)
    # Note: input_output_aliases={1: 0} (x2 -> out) would save the output
    # allocation, but forces an extra copy whenever x is not donated by the
    # caller, so it is intentionally not used here.
    return out.reshape(B, C, H, W)


def eca_reference(x, weight, gamma=2.0, b=1.0):
    """Pure-JAX reference of the intended ECALayer forward."""
    B, C, H, W = x.shape
    pooled = jnp.mean(x.astype(jnp.float32), axis=(2, 3))      # (B, C)
    w2 = weight.reshape(C, C).astype(jnp.float32)
    z = pooled @ w2.T                                           # (B, C)
    s = jax.nn.sigmoid(z * gamma + b).astype(x.dtype)
    return x * s[:, :, None, None]


if __name__ == "__main__":
    key = jax.random.PRNGKey(0)
    kx, kx2, kw = jax.random.split(key, 3)

    B, C, H, W = 2, 8, 16, 16
    x = jax.random.normal(kx, (B, C, H, W), dtype=jnp.float32)

    # Conv1d(C, C, kernel_size=1, bias=False) weight, shape (C, C, 1).
    bound = (1.0 / C) ** 0.5
    weight = jax.random.uniform(kw, (C, C, 1), dtype=jnp.float32,
                                minval=-bound, maxval=bound)

    # Fused single-pass path (small slab -> taken automatically).
    out = jax.block_until_ready(eca_forward(x, weight, gamma=2.0, b=1.0))
    ref = eca_reference(x, weight, gamma=2.0, b=1.0)
    assert out.shape == x.shape and out.dtype == x.dtype
    assert float(jnp.max(jnp.abs(out - ref))) < 2e-3

    # Non-128-multiple spatial size (20x20 -> HW=400): no pad / slice needed.
    x20 = jax.random.normal(kx2, (B, C, 20, 20), dtype=jnp.float32)
    out20 = jax.block_until_ready(eca_forward(x20, weight, gamma=2.0, b=1.0))
    ref20 = eca_reference(x20, weight, gamma=2.0, b=1.0)
    assert float(jnp.max(jnp.abs(out20 - ref20))) < 2e-3

    # Two-pass fallback path (forced) on the same odd spatial size.
    out2p = jax.block_until_ready(
        eca_forward(x20, weight, gamma=2.0, b=1.0, fuse=False))
    assert float(jnp.max(jnp.abs(out2p - ref20))) < 2e-3

    print("KERNEL_OK")
</pallas_src>

<mosaic_0001>
module attributes {stable_mosaic.version = 11 : i64} {
  func.func @_eca_fused_kernel(%arg0: i32, %arg1: memref<8x8xf32, #tpu.memory_space<vmem>>, %arg2: memref<1x8x256xf32, #tpu.memory_space<vmem>>, %arg3: memref<1x8x256xf32, #tpu.memory_space<vmem>>) attributes {dimension_semantics = [#tpu.dimension_semantics<parallel>], iteration_bounds = array<i64: 2>, scalar_prefetch = 0 : i64, scratch_operands = 0 : i64, tpu.core_type = #tpu.core_type<tc>, window_params = [{pipeline_mode = #tpu.pipeline_mode<synchronous>, transform_indices = @transform_0, window_bounds = array<i64: 8, 8>}, {transform_indices = @transform_1, window_bounds = array<i64: 1, 8, 256>}, {transform_indices = @transform_2, window_bounds = array<i64: 1, 8, 256>}]} {
    %c0 = arith.constant 0 : index
    %c0_0 = arith.constant 0 : index
    %c0_1 = arith.constant 0 : index
    %0 = vector.load %arg2[%c0, %c0_0, %c0_1] : memref<1x8x256xf32, #tpu.memory_space<vmem>>, vector<1x8x256xf32>
    %1 = vector.shape_cast %0 : vector<1x8x256xf32> to vector<8x256xf32>
    %cst = arith.constant dense<0.000000e+00> : vector<8xf32>
    %2 = vector.multi_reduction <add>, %1, %cst [1] : vector<8x256xf32> to vector<8xf32>
    %3 = vector.shape_cast %2 : vector<8xf32> to vector<8x1xf32>
    %4 = vector.shape_cast %3 : vector<8x1xf32> to vector<8x1xf32>
    %5 = vector.broadcast %4 : vector<8x1xf32> to vector<8x128xf32>
    %c0_2 = arith.constant 0 : index
    %c0_3 = arith.constant 0 : index
    %6 = vector.load %arg1[%c0_2, %c0_3] : memref<8x8xf32, #tpu.memory_space<vmem>>, vector<8x8xf32>
    %cst_4 = arith.constant dense<0.000000e+00> : vector<8x128xf32>
    %7 = tpu.matmul %6, %5, %cst_4 {dimension_numbers = #tpu.dot_dimension_numbers<[1], [0], [0], [1], [0, 0, 1, 1], [], []>} : vector<8x8xf32>, vector<8x128xf32>, vector<8x128xf32> -> vector<8x128xf32>
    %8 = vector.extract_strided_slice %7 {offsets = [0, 0], sizes = [8, 1], strides = [1, 1]} : vector<8x128xf32> to vector<8x1xf32>
    %cst_5 = arith.constant 1.000000e+00 : f32
    %9 = vector.broadcast %cst_5 : f32 to vector<8x1xf32>
    %10 = arith.addf %8, %9 : vector<8x1xf32>
    %11 = arith.negf %10 : vector<8x1xf32>
    %12 = math.exp %11 : vector<8x1xf32>
    %cst_6 = arith.constant 1.000000e+00 : f32
    %13 = vector.broadcast %cst_6 : f32 to vector<8x1xf32>
    %14 = arith.addf %13, %12 : vector<8x1xf32>
    %15 = arith.divf %13, %14 : vector<8x1xf32>
    %c0_7 = arith.constant 0 : index
    %c0_8 = arith.constant 0 : index
    %c0_9 = arith.constant 0 : index
    %16 = vector.load %arg2[%c0_7, %c0_8, %c0_9] : memref<1x8x256xf32, #tpu.memory_space<vmem>>, vector<1x8x256xf32>
    %17 = vector.shape_cast %16 : vector<1x8x256xf32> to vector<8x256xf32>
    %18 = vector.broadcast %15 : vector<8x1xf32> to vector<8x256xf32>
    %19 = arith.mulf %17, %18 : vector<8x256xf32>
    %c0_10 = arith.constant 0 : index
    %c0_11 = arith.constant 0 : index
    %c0_12 = arith.constant 0 : index
    %20 = vector.load %arg3[%c0_10, %c0_11, %c0_12] : memref<1x8x256xf32, #tpu.memory_space<vmem>>, vector<1x8x256xf32>
    %21 = vector.shape_cast %20 : vector<1x8x256xf32> to vector<8x256xf32>
    %22 = vector.shape_cast %19 : vector<8x256xf32> to vector<1x8x256xf32>
    tpu.vector_store %arg3[%c0_10, %c0_11, %c0_12], %22 {strides = array<i32>} : memref<1x8x256xf32, #tpu.memory_space<vmem>>, vector<1x8x256xf32>,
    return
  }
  func.func @transform_0(%arg0: i32) -> (i32, i32) {
    %c0_i32 = arith.constant 0 : i32
    %c0_i32_0 = arith.constant 0 : i32
    %c0_i32_1 = arith.constant 0 : i32
    return %c0_i32, %c0_i32_0 : i32, i32
  }
  func.func @transform_1(%arg0: i32) -> (i32, i32, i32) {
    %c0_i32 = arith.constant 0 : i32
    %c0_i32_0 = arith.constant 0 : i32
    %c0_i32_1 = arith.constant 0 : i32
    return %arg0, %c0_i32, %c0_i32_0 : i32, i32, i32
  }
  func.func @transform_2(%arg0: i32) -> (i32, i32, i32) {
    %c0_i32 = arith.constant 0 : i32
    %c0_i32_0 = arith.constant 0 : i32
    %c0_i32_1 = arith.constant 0 : i32
    return %arg0, %c0_i32, %c0_i32_0 : i32, i32, i32
  }
}

</mosaic_0001>

<llo_original>
// kernel: tpu_custom_call.1
$region0: #{tpu_custom_call.1}
  #allocation0 [shape = 'u32[]', space=smem, size = 0x4, offset = 0x4, fixed_abs, tag = 'smem constant byte address 0x4 - core index']
  #allocation1 [shape = 'u32[144,128]{1,0:T(1,128)}', space=vmem, size = 0x12000, scoped, tag = 'internal scratch']
  %s0 = inlined_call_operand.hbm [shape: f32[8,8], index: 0, kind: input, shape index: {}]
  %s1 = inlined_call_operand.hbm [shape: f32[2,8,256], index: 1, kind: input, shape index: {}]
  %s2 = inlined_call_operand.hbm [shape: f32[2,8,256], index: 2, kind: output, shape index: {}]
  %s3 = sld [smem:[#allocation0]]
  $region49: #{tpu_custom_call.1} parent=0
    _
  %s5 = ssub.s32 1, %s3
  %s6 = scalar_select 0, %s5, %s3
  $region1: #{tpu_custom_call.1} parent=0
    #allocation2 [shape = 'u8[4096]{0}', space=vmem, size = 0x1000, scoped, tag = 'input window, operand 0, single buffered']
    #allocation3 [shape = 's32[2]{0}', space=sflag, size = 0x8, scoped, tag = 'scoped memory for tpu_custom_call.1']
    #allocation4 [shape = 's32[2]{0}', space=sflag, size = 0x8, scoped, tag = 'scoped memory for tpu_custom_call.1']
    #allocation5 [shape = 'u8[16384]{0}', space=vmem, size = 0x4000, scoped, tag = 'input window, operand 1']
    #allocation6 [shape = 's32[2]{0}', space=sflag, size = 0x8, scoped, tag = 'scoped memory for tpu_custom_call.1']
    #allocation7 [shape = 'u8[16384]{0}', space=vmem, size = 0x4000, scoped, tag = 'output window, operand 0']
    %7 = vsyncpa [#allocation3], 0
    %8 = vsyncpa [#allocation6], 0
    %s9 = scalar_lea.sflag [#allocation6], 1
    %10 = vsyncpa %s9, 0
    %11 = vsyncpa [#allocation4], 0
    %s12 = scalar_lea.sflag [#allocation4], 1
    %13 = vsyncpa %s12, 0
    loop: start=0, step=1, limit=4
    $region2: #{tpu_custom_call.1} parent=1 // loop_pre_header
      _
    $region3: #{tpu_custom_call.1} parent=1 // loop_header
      %s15 = sphi 0, %s19
      %p16 = scmp.ge.s32.totalorder %s15, 4
      %s23 = sphi 0, %s23
      %s25 = sphi 0, %s23
      %s26 = sphi 0, %s25
      %s40 = sphi 0, %s26
      %s46 = sphi 0, %s48
      %s49 = sphi 0, %s46
      %s50 = sphi 0, %s49
      %s66 = sphi 0, %s50
      %s72 = sphi 0, %s74
      %s75 = sphi 0, %s72
      %s76 = sphi 0, %s75
      %s92 = sphi 0, %s76
    $region4: #{tpu_custom_call.1} parent=1 // loop_header_branch
      %18 = sbr.rel (%p16) target = $region8
    $region5: #{tpu_custom_call.1} parent=1 // loop_body
      %s20 = ssub.s32 %s15, 1
      %s21 = ssub.s32 %s15, 2
      %s22 = sadd.s32 %s15, 1
      %s24 = sadd.s32 %s23, 1
      %p27 = scmp.eq.s32.totalorder %s15, 1
      %p28 = scmp.ne.s32.totalorder %s23, %s25
      %p29 = scmp.eq.s32.totalorder %s15, 0
      %p30 = por %p28, %p29
      %p31 = scmp.ne.s32.totalorder %s23, %s25
      %p32 = scmp.eq.s32.totalorder %s20, 1
      %p33 = por %p31, %p32
      %p34 = scmp.ne.s32.totalorder %s25, %s26
      %p35 = scmp.eq.s32.totalorder %s20, 0
      %p36 = por %p34, %p35
      %p37 = scmp.ne.s32.totalorder %s25, %s26
      %p38 = scmp.eq.s32.totalorder %s21, 1
      %p39 = por %p37, %p38
      %p41 = scmp.ne.s32.totalorder %s26, %s40
      %p42 = scmp.eq.s32.totalorder %s21, 0
      %p43 = por %p41, %p42
      %s44 = ssub.s32 %s15, %s22
      %p45 = scmp.eq.s32.totalorder %s44, 0
      %s47 = sadd.s32 %s46, 1
      %s48 = scalar_select %p45, %s46, %s47
      %p51 = pneg %p45
      %p52 = scmp.eq.s32.totalorder %s15, 1
      %p53 = por %p51, %p52
      %p54 = scmp.ne.s32.totalorder %s46, %s49
      %p55 = scmp.eq.s32.totalorder %s15, 0
      %p56 = por %p54, %p55
      %p57 = scmp.ne.s32.totalorder %s46, %s49
      %p58 = scmp.eq.s32.totalorder %s20, 1
      %p59 = por %p57, %p58
      %p60 = scmp.ne.s32.totalorder %s49, %s50
      %p61 = scmp.eq.s32.totalorder %s20, 0
      %p62 = por %p60, %p61
      %p63 = scmp.ne.s32.totalorder %s49, %s50
      %p64 = scmp.eq.s32.totalorder %s21, 1
      %p65 = por %p63, %p64
      %p67 = scmp.ne.s32.totalorder %s50, %s66
      %p68 = scmp.eq.s32.totalorder %s21, 0
      %p69 = por %p67, %p68
      %s70 = ssub.s32 %s15, %s22
      %p71 = scmp.eq.s32.totalorder %s70, 0
      %s73 = sadd.s32 %s72, 1
      %s74 = scalar_select %p71, %s72, %s73
      %p77 = pneg %p71
      %p78 = scmp.eq.s32.totalorder %s15, 1
      %p79 = por %p77, %p78
      %p80 = scmp.ne.s32.totalorder %s72, %s75
      %p81 = scmp.eq.s32.totalorder %s15, 0
      %p82 = por %p80, %p81
      %p83 = scmp.ne.s32.totalorder %s72, %s75
      %p84 = scmp.eq.s32.totalorder %s20, 1
      %p85 = por %p83, %p84
      %p86 = scmp.ne.s32.totalorder %s75, %s76
      %p87 = scmp.eq.s32.totalorder %s20, 0
      %p88 = por %p86, %p87
      %p89 = scmp.ne.s32.totalorder %s75, %s76
      %p90 = scmp.eq.s32.totalorder %s21, 1
      %p91 = por %p89, %p90
      %p93 = scmp.ne.s32.totalorder %s76, %s92
      %p94 = scmp.eq.s32.totalorder %s21, 0
      %p95 = por %p93, %p94
      %p96 = scmp.le.s32.totalorder 1, %s15
      %p97 = scmp.lt.s32.totalorder %s15, 3
      %p98 = pnand %p96, %p97
      %p99 = pneg %p98
      // Predicated region
      $region9: #{tpu_custom_call.1} parent=5 // pred_check
        _
      $region10: #{tpu_custom_call.1} parent=5 // pred_check_branch
        %101 = sbr.rel (%p98) target = $region12
      $region11: #{tpu_custom_call.1} parent=5 // pred_region
        %s102 = ssub.s32 %s15, 1
        // Predicated region
        $region13: #{tpu_custom_call.1} parent=11 // pred_check
          %p103 = pneg %p36
        $region14: #{tpu_custom_call.1} parent=11 // pred_check_branch
          %105 = sbr.rel (%p103) target = $region16
        $region15: #{tpu_custom_call.1} parent=11 // pred_region
          %s107 = ssub.s32 128, 128
          %108 = vsyncadd [#allocation3], %s107
          %s110 = sshll.u32 [#allocation2], 4
          %s111 = int_to_ptr.vmem [resolvable:$true] %s110
          %113 = dma.hbm_to_vmem [thread:$0]  %s0, 128, %s111, [#allocation3]
        $region16: #{tpu_custom_call.1} parent=11 // pred_fallthru
          _
      $region12: #{tpu_custom_call.1} parent=5 // pred_fallthru
        _
      %p114 = scmp.lt.s32.totalorder %s15, 2
      // Predicated region
      $region17: #{tpu_custom_call.1} parent=5 // pred_check
        %p115 = pneg %p114
      $region18: #{tpu_custom_call.1} parent=5 // pred_check_branch
        %117 = sbr.rel (%p115) target = $region20
      $region19: #{tpu_custom_call.1} parent=5 // pred_region
        // Predicated region
        $region21: #{tpu_custom_call.1} parent=19 // pred_check
          %p118 = pneg %p56
        $region22: #{tpu_custom_call.1} parent=19 // pred_check_branch
          %120 = sbr.rel (%p118) target = $region24
        $region23: #{tpu_custom_call.1} parent=19 // pred_region
          %s121 = sand.u32 %s46, 1
          %s122 = scalar_lea.sflag [#allocation6], %s121
          %s123 = sand.u32 %s46, 1
          %s124 = smul.addr %s123, 16
          %s125 = scalar_lea.vmem [#allocation5], %s124
          %s127 = ssub.s32 256, 256
          %128 = vsyncadd %s122, %s127
          %s129 = smul.addr %s15, 2
          %s130 = smul.addr %s129, 128
          %s131 = scalar_lea.hbm %s1, %s130
          %s133 = sshll.u32 %s125, 4
          %s134 = int_to_ptr.vmem [resolvable:$true] %s133
          %136 = dma.hbm_to_vmem [thread:$0]  %s131, 256, %s134, %s122
        $region24: #{tpu_custom_call.1} parent=19 // pred_fallthru
          _
      $region20: #{tpu_custom_call.1} parent=5 // pred_fallthru
        _
      %p137 = scmp.le.s32.totalorder 1, %s15
      %p138 = scmp.lt.s32.totalorder %s15, 3
      %p139 = pnand %p137, %p138
      %p140 = pneg %p139
      // Predicated region
      $region25: #{tpu_custom_call.1} parent=5 // pred_check
        _
      $region26: #{tpu_custom_call.1} parent=5 // pred_check_branch
        %142 = sbr.rel (%p139) target = $region28
      $region27: #{tpu_custom_call.1} parent=5 // pred_region
        %s143 = ssub.s32 %s15, 1
        // Predicated region
        $region29: #{tpu_custom_call.1} parent=27 // pred_check
          %p144 = pneg %p36
        $region30: #{tpu_custom_call.1} parent=27 // pred_check_branch
          %146 = sbr.rel (%p144) target = $region32
        $region31: #{tpu_custom_call.1} parent=27 // pred_region
          %147 = dma.done [#allocation3], 128
        $region32: #{tpu_custom_call.1} parent=27 // pred_fallthru
          _
        %s148 = sand.u32 %s49, 1
        %s149 = scalar_lea.sflag [#allocation6], %s148
        %s150 = sand.u32 %s49, 1
        %s151 = smul.addr %s150, 16
        %s152 = scalar_lea.vmem [#allocation5], %s151
        // Predicated region
        $region33: #{tpu_custom_call.1} parent=27 // pred_check
          %p153 = pneg %p62
        $region34: #{tpu_custom_call.1} parent=27 // pred_check_branch
          %155 = sbr.rel (%p153) target = $region36
        $region35: #{tpu_custom_call.1} parent=27 // pred_region
          %156 = dma.done %s149, 256
        $region36: #{tpu_custom_call.1} parent=27 // pred_fallthru
          _
        %p157 = pneg %p36
        %p158 = pneg %p33
        %s159 = sand.u32 %s49, 1
        %s160 = scalar_lea.sflag [#allocation6], %s159
        %s161 = sand.u32 %s49, 1
        %s162 = smul.addr %s161, 16
        %s163 = scalar_lea.vmem [#allocation5], %s162
        %p164 = pneg %p62
        %p165 = pneg %p59
        %p166 = pneg %p88
        %p167 = pneg %p85
        %s168 = sand.u32 %s75, 1
        %s169 = scalar_lea.sflag [#allocation4], %s168
        %s170 = sand.u32 %s75, 1
        %s171 = smul.addr %s170, 16
        %s172 = scalar_lea.vmem [#allocation7], %s171
        %v173 = vld [vmem:[%s152] sm:$0xff]
        %v174 = vld [vmem:[%s152 + $0x8] sm:$0xff]
        %v175 = vadd.f32 %v173, %v174
        %176 = vadd.xlane.f32.xlu0 %v175
        %v177 = vpop.xlane.xlu0 %176
        %v178 = vld [vmem:[#allocation2] sm:$0xff]
        %vm179 = vcmask 64512
        %v181 = vsel %vm179, %v178, 0
        %183 = vmatprep.subr.mxu0 0.0
        %184 = vmatpush1.msra.mxu0 %v177
        %185 = vmatprep.subr.mxu0 0.0
        %186 = vmatpush1.msra.mxu0 0.0
        %187 = vmatprep.subr.mxu0 0.0
        %188 = vmatpush1.msra.mxu0 0.0
        %189 = vmatprep.subr.mxu0 0.0
        %190 = vmatpush1.msra.mxu0 0.0
        %191 = vmatprep.subr.mxu0 0.0
        %192 = vmatpush1.msra.mxu0 0.0
        %193 = vmatprep.subr.mxu0 0.0
        %194 = vmatpush1.msra.mxu0 0.0
        %195 = vmatprep.subr.mxu0 0.0
        %196 = vmatpush1.msra.mxu0 0.0
        %197 = vmatprep.subr.mxu0 0.0
        %198 = vmatpush1.msra.mxu0 0.0
        %199 = vmatprep.subr.mxu0 0.0
        %200 = vmatpush1.msra.mxu0 0.0
        %201 = vmatprep.subr.mxu0 0.0
        %202 = vmatpush1.msra.mxu0 0.0
        %203 = vmatprep.subr.mxu0 0.0
        %204 = vmatpush1.msra.mxu0 0.0
        %205 = vmatprep.subr.mxu0 0.0
        %206 = vmatpush1.msra.mxu0 0.0
        %207 = vmatprep.subr.mxu0 0.0
        %208 = vmatpush1.msra.mxu0 0.0
        %209 = vmatprep.subr.mxu0 0.0
        %210 = vmatpush1.msra.mxu0 0.0
        %211 = vmatprep.subr.mxu0 0.0
        %212 = vmatpush1.msra.mxu0 0.0
        %213 = vmatprep.subr.mxu0 0.0
        %214 = vmatpush1.msra.mxu0 0.0
        %215 = vmatprep.subr.mxu0 0.0
        %216 = vmatpush1.msra.mxu0 0.0
        %217 = vmatprep.subr.mxu0 0.0
        %218 = vmatpush1.msra.mxu0 0.0
        %219 = vmatprep.subr.mxu0 0.0
        %220 = vmatpush1.msra.mxu0 0.0
        %221 = vmatprep.subr.mxu0 0.0
        %222 = vmatpush1.msra.mxu0 0.0
        %223 = vmatprep.subr.mxu0 0.0
        %224 = vmatpush1.msra.mxu0 0.0
        %225 = vmatprep.subr.mxu0 0.0
        %226 = vmatpush1.msra.mxu0 0.0
        %227 = vmatprep.subr.mxu0 0.0
        %228 = vmatpush1.msra.mxu0 0.0
        %229 = vmatprep.subr.mxu0 0.0
        %230 = vmatpush1.msra.mxu0 0.0
        %231 = vmatprep.subr.mxu0 0.0
        %232 = vmatpush1.msra.mxu0 0.0
        %233 = vmatprep.subr.mxu0 0.0
        %234 = vmatpush1.msra.mxu0 0.0
        %235 = vmatprep.subr.mxu0 0.0
        %236 = vmatpush1.msra.mxu0 0.0
        %237 = vmatprep.subr.mxu0 0.0
        %238 = vmatpush1.msra.mxu0 0.0
        %239 = vmatprep.subr.mxu0 0.0
        %240 = vmatpush1.msra.mxu0 0.0
        %241 = vmatprep.subr.mxu0 0.0
        %242 = vmatpush1.msra.mxu0 0.0
        %243 = vmatprep.subr.mxu0 0.0
        %244 = vmatpush1.msra.mxu0 0.0
        %245 = vmatprep.subr.mxu0 0.0
        %246 = vmatpush1.msra.mxu0 0.0
        %247 = vmatprep.mubr.f32.mxu0 0.0
        %248 = vmatmul.mubr.f32.gmra.mrb[0].mxu0 %v181
        %v249 = vpop.f32.mrb[0].mxu0
        %v250 = vadd.f32 0.0, %v249
        %v251 = vpop.f32.mrb[0].mxu0
        %252 = vdwg.mxu0
        %v253 = vadd.f32 %v250, 1.0
        %v254 = vxor.u32 %v253, 2147483648
        %v255 = vmul.f32 %v254, 1.442695
        %v256 = vpow.pop %v255
        %v257 = vadd.f32 %v256, 1.0
        %v258 = vrcp.pop %v257
        %v259 = vmul.f32 1.0, %v258
        %261 = vset.pattern.permute.xlu0 0
        %262 = vperm.xlu0 %261, %v259
        %v263 = vpop.permute.xlu0 %262
        %v265 = vmul.f32 %v173, %v263
        %v266 = vmul.f32 %v174, %v263
        %267 = vst [vmem:[%s172] sm:$0xff] %v265
        %268 = vst [vmem:[%s172 + $0x8] sm:$0xff] %v266
        %s269 = sand.u32 %s75, 1
        %s270 = scalar_lea.sflag [#allocation4], %s269
        %s271 = sand.u32 %s75, 1
        %s272 = smul.addr %s271, 16
        %s273 = scalar_lea.vmem [#allocation7], %s272
        // Predicated region
        $region37: #{tpu_custom_call.1} parent=27 // pred_check
          %p274 = pneg %p85
        $region38: #{tpu_custom_call.1} parent=27 // pred_check_branch
          %276 = sbr.rel (%p274) target = $region40
        $region39: #{tpu_custom_call.1} parent=27 // pred_region
          %s278 = ssub.s32 256, 256
          %279 = vsyncadd %s270, %s278
          %s280 = smul.addr %s20, 2
          %s281 = smul.addr %s280, 128
          %s282 = scalar_lea.hbm %s2, %s281
          %s284 = sshll.u32 %s273, 4
          %s285 = int_to_ptr.vmem [resolvable:$true] %s284
          %287 = dma.vmem_to_hbm [thread:$0]  %s285, 256, %s282, %s270
        $region40: #{tpu_custom_call.1} parent=27 // pred_fallthru
          _
      $region28: #{tpu_custom_call.1} parent=5 // pred_fallthru
        _
      %p288 = scmp.le.s32.totalorder 2, %s15
      // Predicated region
      $region41: #{tpu_custom_call.1} parent=5 // pred_check
        %p289 = pneg %p288
      $region42: #{tpu_custom_call.1} parent=5 // pred_check_branch
        %291 = sbr.rel (%p289) target = $region44
      $region43: #{tpu_custom_call.1} parent=5 // pred_region
        %s292 = ssub.s32 %s15, 2
        // Predicated region
        $region45: #{tpu_custom_call.1} parent=43 // pred_check
          %p293 = pneg %p91
        $region46: #{tpu_custom_call.1} parent=43 // pred_check_branch
          %295 = sbr.rel (%p293) target = $region48
        $region47: #{tpu_custom_call.1} parent=43 // pred_region
          %s296 = sand.u32 %s76, 1
          %s297 = scalar_lea.sflag [#allocation4], %s296
          %s298 = sand.u32 %s76, 1
          %s299 = smul.addr %s298, 16
          %s300 = scalar_lea.vmem [#allocation7], %s299
          %301 = dma.done %s297, 256
        $region48: #{tpu_custom_call.1} parent=43 // pred_fallthru
          _
      $region44: #{tpu_custom_call.1} parent=5 // pred_fallthru
        _
    $region6: #{tpu_custom_call.1} parent=1 // loop_footer
      %s19 = sadd.s32 1, %s15
    $region7: #{tpu_custom_call.1} parent=1 // loop_footer_branch
      %14 = sbr.rel target = $region3
    $region8: #{tpu_custom_call.1} parent=1 // loop_exit
      _
    %302 = vsyncpa [#allocation3], 1
    %s303 = scalar_lea.sflag [#allocation3], 1
    %304 = vsyncpa %s303, 1
    %305 = vsyncpa [#allocation6], 1
    %s306 = scalar_lea.sflag [#allocation6], 1
    %307 = vsyncpa %s306, 1
    %308 = vsyncpa [#allocation4], 1
    %s309 = scalar_lea.sflag [#allocation4], 1
    %310 = vsyncpa %s309, 1

</llo_original>
